<compile_context>
chip_gen: v7x
topology: tpu7x:2x2x1
jax: 0.10.0
libtpu: 0.0.40
codegen_flags: <defaults>
</compile_context>

<pallas_src>
import functools
import numpy as np
import jax
import jax.numpy as jnp
from jax import lax
from jax.experimental import pallas as pl
from jax.experimental.pallas import tpu as pltpu

_VMEM_LIMIT = 32 * 1024 * 1024  # safe on v5e/v6e (128 MiB) and v7x (64 MiB) VMEM


def _round_up(x, m):
    return (x + m - 1) // m * m


# ----------------------------------------------------------------------------
# Pallas kernels: tiled MXU matmul with fused bias epilogue (bf16 in, f32 acc)
# ----------------------------------------------------------------------------
def _mm_bias_kernel(a_ref, b_ref, bias_ref, o_ref):
    o_ref[...] = (jnp.dot(a_ref[...], b_ref[...],
                          preferred_element_type=jnp.float32) + bias_ref[...])


def _mm_acc_bias_kernel(a_ref, b_ref, bias_ref, o_ref, acc_ref):
    @pl.when(pl.program_id(2) == 0)
    def _():
        acc_ref[...] = jnp.zeros_like(acc_ref)

    acc_ref[...] += jnp.dot(a_ref[...], b_ref[...],
                            preferred_element_type=jnp.float32)

    @pl.when(pl.program_id(2) == pl.num_programs(2) - 1)
    def _():
        o_ref[...] = acc_ref[...] + bias_ref[...]


@functools.lru_cache(maxsize=None)
def _matmul_call(Mp, Kp, Np, tm, tk, tn):
    mg, ng, kg = Mp // tm, Np // tn, Kp // tk
    if kg == 1:
        # Whole K resident in VMEM: no reduction grid axis, output written once.
        return pl.pallas_call(
            _mm_bias_kernel,
            out_shape=jax.ShapeDtypeStruct((Mp, Np), jnp.float32),
            grid=(mg, ng),
            in_specs=[pl.BlockSpec((tm, tk), lambda i, j: (i, 0)),
                      pl.BlockSpec((tk, tn), lambda i, j: (0, j)),
                      pl.BlockSpec((1, tn), lambda i, j: (0, j))],
            out_specs=pl.BlockSpec((tm, tn), lambda i, j: (i, j)),
            compiler_params=pltpu.CompilerParams(
                dimension_semantics=("parallel", "parallel"),
                vmem_limit_bytes=_VMEM_LIMIT),
        )
    return pl.pallas_call(
        _mm_acc_bias_kernel,
        out_shape=jax.ShapeDtypeStruct((Mp, Np), jnp.float32),
        grid=(mg, ng, kg),
        in_specs=[pl.BlockSpec((tm, tk), lambda i, j, k: (i, k)),
                  pl.BlockSpec((tk, tn), lambda i, j, k: (k, j)),
                  pl.BlockSpec((1, tn), lambda i, j, k: (0, j))],
        out_specs=pl.BlockSpec((tm, tn), lambda i, j, k: (i, j)),
        scratch_shapes=[pltpu.VMEM((tm, tn), jnp.float32)],
        compiler_params=pltpu.CompilerParams(
            dimension_semantics=("parallel", "parallel", "arbitrary"),
            vmem_limit_bytes=_VMEM_LIMIT),
    )


def pallas_matmul(a, b, bias=None):
    """(M,K) @ (K,N) + bias with bf16 MXU inputs and f32 accumulation."""
    M, K = a.shape
    K2, N = b.shape
    assert K == K2
    tm = M if M <= 256 else 256
    tk = K if K <= 4608 else 512          # all K in this model fit a full block
    tn = N if N <= 1024 else 512          # no padding of small N (23/4/37/...)
    Mp, Kp, Np = _round_up(M, tm), _round_up(K, tk), _round_up(N, tn)

    a = a.astype(jnp.bfloat16)
    b = b.astype(jnp.bfloat16)
    if (Mp, Kp) != (M, K):
        a = jnp.pad(a, ((0, Mp - M), (0, Kp - K)))
    if (Kp, Np) != (K, N):
        b = jnp.pad(b, ((0, Kp - K), (0, Np - N)))
    if bias is None:
        bias_p = jnp.zeros((1, Np), jnp.float32)
    else:
        bias_p = bias.reshape(1, N).astype(jnp.float32)
        if Np != N:
            bias_p = jnp.pad(bias_p, ((0, 0), (0, Np - N)))

    out = _matmul_call(Mp, Kp, Np, tm, tk, tn)(a, b, bias_p)
    if (Mp, Np) != (M, N):
        out = out[:M, :N]
    return out


# ----------------------------------------------------------------------------
# Pallas kernel: fused per-channel affine (folded BatchNorm) + ReLU
# ----------------------------------------------------------------------------
def _scale_shift_relu_kernel(x_ref, s_ref, t_ref, o_ref):
    o_ref[...] = jnp.maximum(x_ref[...] * s_ref[...] + t_ref[...], 0.0)


@functools.lru_cache(maxsize=None)
def _bn_relu_call(Mp, C, tm):
    return pl.pallas_call(
        _scale_shift_relu_kernel,
        out_shape=jax.ShapeDtypeStruct((Mp, C), jnp.float32),
        grid=(Mp // tm,),
        in_specs=[pl.BlockSpec((tm, C), lambda i: (i, 0)),
                  pl.BlockSpec((1, C), lambda i: (0, 0)),
                  pl.BlockSpec((1, C), lambda i: (0, 0))],
        out_specs=pl.BlockSpec((tm, C), lambda i: (i, 0)),
        compiler_params=pltpu.CompilerParams(
            dimension_semantics=("parallel",),
            vmem_limit_bytes=_VMEM_LIMIT),
    )


def _scale_shift_relu(x2d, scale, shift):
    M0, C0 = x2d.shape
    fold = 1
    if C0 < 128 and 128 % C0 == 0:
        fold = 128 // C0
        while fold > 1 and M0 % fold != 0:
            fold //= 2
    if fold > 1:
        # Lane-dense layout for narrow channel counts (e.g. C=64 -> width 128).
        x2d = x2d.reshape(M0 // fold, C0 * fold)
        scale = jnp.tile(scale, fold)
        shift = jnp.tile(shift, fold)
    M, C = x2d.shape
    tm = 1024 if C <= 256 else 512
    if M <= tm:
        tm = _round_up(M, 8)
    Mp = _round_up(M, tm)
    if Mp != M:
        x2d = jnp.pad(x2d, ((0, Mp - M), (0, 0)))
    y = _bn_relu_call(Mp, C, tm)(x2d, scale.reshape(1, C), shift.reshape(1, C))
    return y[:M].reshape(M0, C0)


def batchnorm_relu(x, gamma, beta, groups=1, eps=1e-5):
    # nn.BatchNorm2d training mode: biased batch statistics over (N, H, W).
    # `groups` splits the batch into independent statistics groups so that the
    # two MultiDirectionNet orientations (batched together for MXU efficiency)
    # keep exactly their original per-call statistics.
    N, H, W, C = x.shape
    G = groups
    xg = x.reshape(G, (N // G) * H * W, C)
    mean = jnp.mean(xg, axis=1, keepdims=True)               # (G, 1, C)
    var = jnp.mean(jnp.square(xg - mean), axis=1)            # (G, C)
    scale = gamma[None, :] / jnp.sqrt(var + eps)
    shift = beta[None, :] - mean[:, 0, :] * scale
    outs = [_scale_shift_relu(xg[g], scale[g], shift[g]) for g in range(G)]
    return jnp.concatenate(outs, axis=0).reshape(N, H, W, C)


# ----------------------------------------------------------------------------
# Conv 3x3 (stride 1, pad 1) via bf16 im2col + Pallas matmul (bias fused)
# ----------------------------------------------------------------------------
def conv3x3(x, wmat, b):
    # x: (N, H, W, Cin) NHWC; wmat: (9*Cin, Cout) bf16 in (kh, kw, cin) order.
    N, H, W, Cin = x.shape
    Cout = wmat.shape[1]
    xp = jnp.pad(x.astype(jnp.bfloat16), ((0, 0), (1, 1), (1, 1), (0, 0)))
    cols = jnp.concatenate(
        [xp[:, dh:dh + H, dw:dw + W, :] for dh in range(3) for dw in range(3)],
        axis=-1).reshape(N * H * W, 9 * Cin)
    y = pallas_matmul(cols, wmat, b)
    return y.reshape(N, H, W, Cout)


def conv_bn_relu(x, p, groups=1):
    y = conv3x3(x, p['wmat'], p['b'])
    return batchnorm_relu(y, p['gamma'], p['beta'], groups=groups)


def maxpool(x, kh, kw, sh, sw, ph, pw):
    return lax.reduce_window(
        x, jnp.array(-jnp.inf, x.dtype), lax.max,
        (1, kh, kw, 1), (1, sh, sw, 1),
        ((0, 0), (ph, ph), (pw, pw), (0, 0)))


# ----------------------------------------------------------------------------
# Pallas kernel: bidirectional LSTM — both directions in one call, grid=(2,)
# ----------------------------------------------------------------------------
def _bilstm_kernel(gx_ref, whh_ref, hs_ref, h_sc, c_sc):
    # gx_ref: (T, B, 4H) pre-projected inputs for this direction (bias folded)
    # whh_ref: (H, 4H); hs_ref: (T, B, H)
    T = gx_ref.shape[0]
    H = whh_ref.shape[0]
    d = pl.program_id(0)                        # 0 = forward, 1 = backward
    h_sc[...] = jnp.zeros_like(h_sc)
    c_sc[...] = jnp.zeros_like(c_sc)

    def step(t, carry):
        tt = jnp.where(d == 0, t, T - 1 - t)    # reverse time in-kernel (no flips)
        g = gx_ref[tt] + jnp.dot(h_sc[...], whh_ref[...],
                                 preferred_element_type=jnp.float32)
        i = jax.nn.sigmoid(g[:, 0:H])
        f = jax.nn.sigmoid(g[:, H:2 * H])
        gg = jnp.tanh(g[:, 2 * H:3 * H])
        o = jax.nn.sigmoid(g[:, 3 * H:4 * H])
        c = f * c_sc[...] + i * gg
        h = o * jnp.tanh(c)
        c_sc[...] = c
        h_sc[...] = h
        hs_ref[tt] = h
        return carry

    lax.fori_loop(0, T, step, 0)


@functools.lru_cache(maxsize=None)
def _bilstm_call(T, B, H):
    return pl.pallas_call(
        _bilstm_kernel,
        out_shape=jax.ShapeDtypeStruct((2, T, B, H), jnp.float32),
        grid=(2,),
        in_specs=[pl.BlockSpec((None, T, B, 4 * H), lambda d: (d, 0, 0, 0)),
                  pl.BlockSpec((None, H, 4 * H), lambda d: (d, 0, 0))],
        out_specs=pl.BlockSpec((None, T, B, H), lambda d: (d, 0, 0, 0)),
        scratch_shapes=[pltpu.VMEM((B, H), jnp.float32),
                        pltpu.VMEM((B, H), jnp.float32)],
        compiler_params=pltpu.CompilerParams(
            dimension_semantics=("parallel",),   # one direction per core on v7x
            vmem_limit_bytes=_VMEM_LIMIT),
    )


def blstm_forward(p, x):
    # x: (T, B, C).  nn.LSTM(512, 256, bidirectional=True, dropout=0.3);
    # dropout is inert for a single-layer LSTM (only applied between layers).
    T, B, C = x.shape
    H = p['w_hh'].shape[1]
    # One fused input projection for both directions: N = 8H, bias fused.
    gx = pallas_matmul(x.reshape(T * B, C), p['w_ih_cat'], p['bias_cat'])
    gx = gx.reshape(T, B, 2, 4 * H).transpose(2, 0, 1, 3)        # (2, T, B, 4H)
    hs = _bilstm_call(T, B, H)(gx, p['w_hh'])                    # (2, T, B, H)
    return jnp.concatenate([hs[0], hs[1]], axis=2)               # (T, B, 2H)


# ----------------------------------------------------------------------------
# Pallas kernel: attention + GRU decoding loop (whole decode in-kernel)
# ----------------------------------------------------------------------------
def _attention_decode_kernel(feats_ref, fproj_ref, gi_emb_ref,
                             h2hw_ref, h2hb_ref, scorew_ref,
                             wih_ctx_ref, whh_ref, bhh_ref,
                             hid_ref, h_sc):
    H = h_sc.shape[1]
    S = gi_emb_ref.shape[0]
    h_sc[...] = jnp.zeros_like(h_sc)

    def step(s, carry):
        h = h_sc[...]
        hp = jnp.dot(h, h2hw_ref[...], preferred_element_type=jnp.float32) + h2hb_ref[...]
        e = jnp.tanh(fproj_ref[...] + hp[None, :, :])                 # (T, B, H)
        em = jnp.sum(e * scorew_ref[...][None, :, :], axis=-1)        # (T, B)
        m = jnp.max(em, axis=0, keepdims=True)
        ex = jnp.exp(em - m)
        alpha = ex / jnp.sum(ex, axis=0, keepdims=True)               # softmax over T
        ctx = jnp.sum(feats_ref[...] * alpha[:, :, None], axis=0)     # (B, C)
        # embedding part of the GRU input gate was hoisted out of the loop
        gi = (jnp.dot(ctx, wih_ctx_ref[...], preferred_element_type=jnp.float32)
              + gi_emb_ref[s])
        gh = jnp.dot(h, whh_ref[...], preferred_element_type=jnp.float32) + bhh_ref[...]
        r = jax.nn.sigmoid(gi[:, 0:H] + gh[:, 0:H])
        z = jax.nn.sigmoid(gi[:, H:2 * H] + gh[:, H:2 * H])
        n = jnp.tanh(gi[:, 2 * H:3 * H] + r * gh[:, 2 * H:3 * H])
        hn = (1.0 - z) * n + z * h
        h_sc[...] = hn
        hid_ref[s] = hn
        return carry

    lax.fori_loop(0, S, step, 0)


@functools.lru_cache(maxsize=None)
def _attn_call(S, T, B, C, H):
    del T, C  # shapes are carried by the operands; keys the cache only
    return pl.pallas_call(
        _attention_decode_kernel,
        out_shape=jax.ShapeDtypeStruct((S, B, H), jnp.float32),
        in_specs=[pl.BlockSpec(memory_space=pltpu.MemorySpace.VMEM)] * 9,
        out_specs=pl.BlockSpec(memory_space=pltpu.MemorySpace.VMEM),
        scratch_shapes=[pltpu.VMEM((B, H), jnp.float32)],
        compiler_params=pltpu.CompilerParams(vmem_limit_bytes=_VMEM_LIMIT),
    )


# ----------------------------------------------------------------------------
# Pallas kernel: FG combine  tanh(c1*f1 + c2*f2 + c3*f3 + c4*f4)
# ----------------------------------------------------------------------------
def _fg_kernel(f_ref, c_ref, o_ref):
    acc = f_ref[0] * c_ref[0]
    for k in range(1, 4):
        acc = acc + f_ref[k] * c_ref[k]
    o_ref[...] = jnp.tanh(acc)


@functools.lru_cache(maxsize=None)
def _fg_call(T, B, C):
    return pl.pallas_call(
        _fg_kernel,
        out_shape=jax.ShapeDtypeStruct((T, B, C), jnp.float32),
        in_specs=[pl.BlockSpec(memory_space=pltpu.MemorySpace.VMEM)] * 2,
        out_specs=pl.BlockSpec(memory_space=pltpu.MemorySpace.VMEM),
        compiler_params=pltpu.CompilerParams(vmem_limit_bytes=_VMEM_LIMIT),
    )


# ----------------------------------------------------------------------------
# Module forwards (glue around the kernels)
# ----------------------------------------------------------------------------
def bcnn_forward(p, x):
    x = conv_bn_relu(x, p['c1'])
    x = maxpool(x, 2, 2, 2, 2, 0, 0)
    x = conv_bn_relu(x, p['c2'])
    x = maxpool(x, 2, 2, 2, 2, 1, 1)
    x = conv_bn_relu(x, p['c3'])
    x = conv_bn_relu(x, p['c4'])
    return x                                           # (B, 26, 26, 256) NHWC


def cluenet_forward(p, x):
    B = x.shape[0]
    x = conv_bn_relu(x, p['c1'])
    x = maxpool(x, 2, 2, 2, 2, 1, 1)
    x = conv_bn_relu(x, p['c2'])
    x = maxpool(x, 2, 2, 2, 2, 1, 1)                   # (B, 8, 8, 512)
    # PyTorch view(-1, 64) flattens NCHW memory order -> go back to NCHW first.
    x = jnp.transpose(x, (0, 3, 1, 2)).reshape(B * 512, 64)
    x = jnp.maximum(pallas_matmul(x, p['l1_wT'], p['l1_b']), 0.0)      # (B*512, 23)
    x = x.reshape(B, 512, 23).transpose(0, 2, 1).reshape(B * 23, 512)
    x = jnp.maximum(pallas_matmul(x, p['l2_wT'], p['l2_b']), 0.0)      # (B*23, 4)
    x = jax.nn.softmax(x.reshape(B, 23, 4), axis=2)
    return jnp.transpose(x, (0, 2, 1))                 # (B, 4, 23)


def multi_forward(p, x, groups=1):
    x = conv_bn_relu(x, p['c1'], groups); x = maxpool(x, 2, 2, 2, 1, 1, 0)
    x = conv_bn_relu(x, p['c2'], groups); x = maxpool(x, 2, 2, 2, 1, 0, 1)
    x = conv_bn_relu(x, p['c3'], groups); x = maxpool(x, 2, 2, 2, 1, 0, 0)
    x = conv_bn_relu(x, p['c4'], groups); x = maxpool(x, 2, 2, 2, 1, 0, 0)
    x = conv_bn_relu(x, p['c5'], groups)
    # TODO(synk): the fifth MaxPool2d((2,2),(2,1)) is degenerate here (H==1, no
    # padding; PyTorch itself errors at the shapes the rest of the net requires),
    # so the pooling window height is clamped to the available height.
    x = maxpool(x, min(2, x.shape[1]), 2, 2, 1, 0, 0)  # (N, 1, 23, 512)
    N, Hh, W, C = x.shape
    assert Hh == 1, 'The height must be 1'
    x = jnp.transpose(x[:, 0], (1, 0, 2))              # (T=23, N, 512)
    return blstm_forward(p['blstm'], x)                # (23, N, 512)


def fg_forward(f1, f2, f3, f4, clues):
    T, B, C = f1.shape
    c = jnp.transpose(clues, (1, 2, 0))[..., None]     # (4, 23, B, 1)
    f = jnp.stack([f1, f2, f3, f4], axis=0)            # (4, 23, B, 512)
    return _fg_call(T, B, C)(f.astype(jnp.float32), c.astype(jnp.float32))


def attention_forward(p, feats, text_length, text):
    nT, nB, nC = feats.shape
    H = p['h2h_wT'].shape[0]
    num_steps = int(np.max(text_length))
    # Host-side target construction, exactly as the PyTorch training branch.
    targets = np.zeros((nB, num_steps + 1), dtype=np.int32)
    start = 0
    for i in range(nB):
        l = int(text_length[i])
        targets[i, 1:1 + l] = np.asarray(text[start:start + l]) + 1
        start += l
    targets = targets.T[:num_steps]                                    # (S, B)
    emb_seq = jnp.take(p['char_emb'], jnp.asarray(targets), axis=0)    # (S, B, 128)
    S, E = num_steps, emb_seq.shape[2]
    fproj = pallas_matmul(feats.reshape(nT * nB, nC), p['i2h_wT']).reshape(nT, nB, H)
    # Hoisted: embedding part of the GRU input projection (+ b_ih), all S steps.
    gi_emb = pallas_matmul(emb_seq.reshape(S * nB, E), p['gru_wih_emb_T'],
                           p['gru_bih']).reshape(S, nB, 3 * H)
    hiddens = _attn_call(S, nT, nB, nC, H)(
        feats.astype(jnp.float32), fproj, gi_emb,
        p['h2h_wT'], p['h2h_b'].reshape(1, H), p['score_w'],
        p['gru_wih_ctx_T'], p['gru_whh_T'], p['gru_bhh'].reshape(1, 3 * H))
    rows = [hiddens[:int(text_length[b]), b, :] for b in range(nB)]
    new_hiddens = jnp.concatenate(rows, axis=0)                        # (num_labels, H)
    return pallas_matmul(new_hiddens, p['gen_wT'], p['gen_b'])


def aon_forward(params, image_nchw, text_length, text, text_rev, test=False):
    # TODO(synk): only the training (test=False) decoding branch is implemented.
    del text_rev, test
    x = jnp.transpose(image_nchw, (0, 2, 3, 1)).astype(jnp.float32)    # NCHW -> NHWC
    x_lr = bcnn_forward(params['bcnn'], x)                             # (B, 26, 26, 256)
    # NCHW permute(0,1,3,2)+flip(dim 3)  ==  NHWC transpose(0,2,1,3)+flip(axis 2)
    x_td = jnp.flip(jnp.transpose(x_lr, (0, 2, 1, 3)), axis=2)
    B = x_lr.shape[0]
    # Both orientations share MultiDirectionNet weights -> batch them (B -> 2B);
    # per-orientation BN statistics are preserved via groups=2.
    x_all = jnp.concatenate([x_lr, x_td], axis=0)                      # (2B, 26, 26, 256)
    f_all = multi_forward(params['multi'], x_all, groups=2)            # (23, 2B, 512)
    f_lr, f_td = f_all[:, :B, :], f_all[:, B:, :]
    f_rl = jnp.flip(f_lr, axis=0)
    f_dt = jnp.flip(f_td, axis=0)
    clues = cluenet_forward(params['clue'], x_lr)                      # (B, 4, 23)
    comb = fg_forward(f_lr, f_rl, f_td, f_dt, clues)                   # (23, B, 512)
    dec = blstm_forward(params['dec_blstm'], comb)                     # (23, B, 512)
    probs = attention_forward(params['attn'], dec, text_length, text)  # (num_labels, n_class)
    return {'result': probs}


# ----------------------------------------------------------------------------
# Deterministic parameter initialization (shapes from the PyTorch __init__),
# with weights pre-transposed / pre-cast once for the kernels.
# ----------------------------------------------------------------------------
def init_params(seed, n_class):
    key = [jax.random.PRNGKey(seed)]

    def nrm(shape, scale=1.0):
        key[0], sub = jax.random.split(key[0])
        return scale * jax.random.normal(sub, shape, dtype=jnp.float32)

    def conv(cin, cout):
        w = nrm((cout, cin, 3, 3), (2.0 / (cin * 9)) ** 0.5)            # kaiming_normal_
        wmat = jnp.transpose(w, (2, 3, 1, 0)).reshape(9 * cin, cout).astype(jnp.bfloat16)
        return dict(wmat=wmat,
                    b=jnp.zeros((cout,), jnp.float32),
                    gamma=jnp.ones((cout,), jnp.float32),               # BN weight = 1
                    beta=jnp.zeros((cout,), jnp.float32))               # BN bias = 0

    def linear(cin, cout):
        return nrm((cout, cin), 1.0 / cin ** 0.5), jnp.zeros((cout,), jnp.float32)

    def lstm_bidir(cin, h):
        s = 1.0 / h ** 0.5
        w_f, w_b = nrm((4 * h, cin), s), nrm((4 * h, cin), s)
        wh_f, wh_b = nrm((4 * h, h), s), nrm((4 * h, h), s)
        bias_f = nrm((4 * h,), s) + nrm((4 * h,), s)                    # b_ih + b_hh
        bias_b = nrm((4 * h,), s) + nrm((4 * h,), s)
        return dict(
            w_ih_cat=jnp.concatenate([w_f.T, w_b.T], axis=1).astype(jnp.bfloat16),  # (cin, 8h)
            bias_cat=jnp.concatenate([bias_f, bias_b], axis=0),                     # (8h,)
            w_hh=jnp.stack([wh_f.T, wh_b.T], axis=0))                               # (2, h, 4h)

    H = 256
    l1_w, l1_b = linear(64, 23)
    l2_w, l2_b = linear(512, 4)
    i2h_w, _ = linear(512, H)
    h2h_w, h2h_b = linear(H, H)
    score_w, _ = linear(H, 1)
    gen_w, gen_b = linear(H, n_class)
    s = 1.0 / H ** 0.5
    gru_wih = nrm((3 * H, 512 + 128), s)
    gru_whh = nrm((3 * H, H), s)
    gru_bih = nrm((3 * H,), s)
    gru_bhh = nrm((3 * H,), s)
    return {
        'bcnn': dict(c1=conv(1, 64), c2=conv(64, 128), c3=conv(128, 256), c4=conv(256, 256)),
        'clue': dict(c1=conv(256, 512), c2=conv(512, 512),
                     l1_wT=l1_w.T.astype(jnp.bfloat16), l1_b=l1_b,
                     l2_wT=l2_w.T.astype(jnp.bfloat16), l2_b=l2_b),
        'multi': dict(c1=conv(256, 512), c2=conv(512, 512), c3=conv(512, 512),
                      c4=conv(512, 512), c5=conv(512, 512),
                      blstm=lstm_bidir(512, H)),
        'dec_blstm': lstm_bidir(512, H),
        'attn': dict(i2h_wT=i2h_w.T.astype(jnp.bfloat16),
                     h2h_wT=h2h_w.T, h2h_b=h2h_b, score_w=score_w,
                     gru_wih_ctx_T=gru_wih[:, :512].T,                  # (512, 3H) used in-kernel
                     gru_wih_emb_T=gru_wih[:, 512:].T.astype(jnp.bfloat16),
                     gru_whh_T=gru_whh.T, gru_bih=gru_bih, gru_bhh=gru_bhh,
                     gen_wT=gen_w.T.astype(jnp.bfloat16), gen_b=gen_b,
                     char_emb=nrm((n_class + 1, 128), 1.0)),
    }


if __name__ == "__main__":
    B = 2
    n_class = 37  # synthetic alphabet size
    # 100x100 input is forced by ClueNet's hard-coded Linear(64, 23) and FG's 23-wide clue.
    k_img, _ = jax.random.split(jax.random.PRNGKey(0))
    image = jax.random.normal(k_img, (B, 1, 100, 100), dtype=jnp.float32)
    text_length = np.array([3, 5], dtype=np.int32)
    text = np.array([5, 1, 7, 2, 9, 4, 0, 11], dtype=np.int32)   # sum == 8 labels
    text_rev = text[::-1].copy()

    params = init_params(1234, n_class)
    out = aon_forward(params, image, text_length, text, text_rev, test=False)
    res = jax.block_until_ready(out['result'])
    assert res.shape == (int(text_length.sum()), n_class)
    assert np.all(np.isfinite(np.asarray(res)))
    print("KERNEL_OK")
</pallas_src>

<mosaic_0001>
module attributes {stable_mosaic.version = 11 : i64} {
  func.func @_mm_bias_kernel(%arg0: i32, %arg1: i32, %arg2: memref<256x9xbf16, #tpu.memory_space<vmem>>, %arg3: memref<9x64xbf16, #tpu.memory_space<vmem>>, %arg4: memref<1x64xf32, #tpu.memory_space<vmem>>, %arg5: memref<256x64xf32, #tpu.memory_space<vmem>>) attributes {dimension_semantics = [#tpu.dimension_semantics<parallel>, #tpu.dimension_semantics<parallel>], iteration_bounds = array<i64: 79, 1>, scalar_prefetch = 0 : i64, scratch_operands = 0 : i64, tpu.core_type = #tpu.core_type<tc>, window_params = [{transform_indices = @transform_0, window_bounds = array<i64: 256, 9>}, {transform_indices = @transform_1, window_bounds = array<i64: 9, 64>}, {transform_indices = @transform_2, window_bounds = array<i64: 1, 64>}, {transform_indices = @transform_3, window_bounds = array<i64: 256, 64>}]} {
    %c0 = arith.constant 0 : index
    %c0_0 = arith.constant 0 : index
    %0 = vector.load %arg2[%c0, %c0_0] : memref<256x9xbf16, #tpu.memory_space<vmem>>, vector<256x9xbf16>
    %c0_1 = arith.constant 0 : index
    %c0_2 = arith.constant 0 : index
    %1 = vector.load %arg3[%c0_1, %c0_2] : memref<9x64xbf16, #tpu.memory_space<vmem>>, vector<9x64xbf16>
    %cst = arith.constant dense<0.000000e+00> : vector<256x64xf32>
    %2 = tpu.matmul %0, %1, %cst {dimension_numbers = #tpu.dot_dimension_numbers<[1], [0], [0], [1], [0, 0, 1, 1], [], []>} : vector<256x9xbf16>, vector<9x64xbf16>, vector<256x64xf32> -> vector<256x64xf32>
    %c0_3 = arith.constant 0 : index
    %c0_4 = arith.constant 0 : index
    %3 = vector.load %arg4[%c0_3, %c0_4] : memref<1x64xf32, #tpu.memory_space<vmem>>, vector<1x64xf32>
    %4 = vector.broadcast %3 : vector<1x64xf32> to vector<256x64xf32>
    %5 = arith.addf %2, %4 : vector<256x64xf32>
    %c0_5 = arith.constant 0 : index
    %c0_6 = arith.constant 0 : index
    %6 = vector.load %arg5[%c0_5, %c0_6] : memref<256x64xf32, #tpu.memory_space<vmem>>, vector<256x64xf32>
    tpu.vector_store %arg5[%c0_5, %c0_6], %5 {strides = array<i32>} : memref<256x64xf32, #tpu.memory_space<vmem>>, vector<256x64xf32>,
    return
  }
  func.func @transform_0(%arg0: i32, %arg1: i32) -> (i32, i32) {
    %c0_i32 = arith.constant 0 : i32
    %c0_i32_0 = arith.constant 0 : i32
    return %arg0, %c0_i32 : i32, i32
  }
  func.func @transform_1(%arg0: i32, %arg1: i32) -> (i32, i32) {
    %c0_i32 = arith.constant 0 : i32
    %c0_i32_0 = arith.constant 0 : i32
    return %c0_i32, %arg1 : i32, i32
  }
  func.func @transform_2(%arg0: i32, %arg1: i32) -> (i32, i32) {
    %c0_i32 = arith.constant 0 : i32
    %c0_i32_0 = arith.constant 0 : i32
    return %c0_i32, %arg1 : i32, i32
  }
  func.func @transform_3(%arg0: i32, %arg1: i32) -> (i32, i32) {
    %c0_i32 = arith.constant 0 : i32
    return %arg0, %arg1 : i32, i32
  }
}

</mosaic_0001>

<llo_original>
// kernel: tpu_custom_call.1
$region0: #{tpu_custom_call.1}
  #allocation0 [shape = 'u32[]', space=smem, size = 0x4, offset = 0x4, fixed_abs, tag = 'smem constant byte address 0x4 - core index']
  #allocation1 [shape = 'u32[144,128]{1,0:T(1,128)}', space=vmem, size = 0x12000, scoped, tag = 'internal scratch']
  %s0 = inlined_call_operand.vmem [shape: bf16[20224,9], index: 0, kind: input, shape index: {}]
  %s1 = inlined_call_operand.vmem [shape: bf16[9,64], index: 1, kind: input, shape index: {}]
  %s2 = inlined_call_operand.vmem [shape: f32[1,64], index: 2, kind: input, shape index: {}]
  %s3 = inlined_call_operand.vmem [shape: f32[20224,64], index: 3, kind: output, shape index: {}]
  %s4 = sld [smem:[#allocation0]]
  $region45: #{tpu_custom_call.1} parent=0
    _
  %s6 = ssub.s32 1, %s4
  %s7 = scalar_select 0, %s6, %s4
  loop: start=0, step=1, limit=81
  $region2: #{tpu_custom_call.1} parent=0 // loop_pre_header
    _
  $region3: #{tpu_custom_call.1} parent=0 // loop_header
    %s9 = sphi 0, %s13
    %p10 = scmp.ge.s32.totalorder %s9, 81
    %s16 = sphi 0, %s28
    %s17 = sphi 0, %s24
    %s18 = sphi 0, %s16
    %s19 = sphi 0, %s17
    %s20 = sphi 0, %s18
    %s21 = sphi 0, %s19
    %s31 = sphi 0, %s33
    %s34 = sphi 0, %s31
    %s35 = sphi 0, %s34
    %s51 = sphi 0, %s35
    %s57 = sphi 0, %s59
    %s60 = sphi 0, %s57
    %s61 = sphi 0, %s60
    %s77 = sphi 0, %s61
    %s83 = sphi 0, %s85
    %s86 = sphi 0, %s83
    %s87 = sphi 0, %s86
    %s103 = sphi 0, %s87
    %s111 = sphi 0, %s113
    %s114 = sphi 0, %s111
    %s115 = sphi 0, %s114
    %s131 = sphi 0, %s115
  $region4: #{tpu_custom_call.1} parent=0 // loop_header_branch
    %12 = sbr.rel (%p10) target = $region8
  $region5: #{tpu_custom_call.1} parent=0 // loop_body
    %s14 = ssub.s32 %s9, 1
    %s15 = ssub.s32 %s9, 2
    %s22 = sadd.s32 1, %s17
    %p23 = scmp.ge.s32.totalorder %s22, 1
    %s24 = scalar_select %p23, 0, %s22
    %s25 = sadd.s32 1, %s16
    %s26 = scalar_select %p23, %s25, %s16
    %p27 = scmp.ge.s32.totalorder %s26, 79
    %s28 = scalar_select %p27, 0, %s26
    %s29 = ssub.s32 %s16, %s28
    %p30 = scmp.eq.s32.totalorder %s29, 0
    %s32 = sadd.s32 %s31, 1
    %s33 = scalar_select %p30, %s31, %s32
    %p36 = pneg %p30
    %p37 = scmp.eq.s32.totalorder %s9, 78
    %p38 = por %p36, %p37
    %p39 = scmp.ne.s32.totalorder %s31, %s34
    %p40 = scmp.eq.s32.totalorder %s9, 0
    %p41 = por %p39, %p40
    %p42 = scmp.ne.s32.totalorder %s31, %s34
    %p43 = scmp.eq.s32.totalorder %s14, 78
    %p44 = por %p42, %p43
    %p45 = scmp.ne.s32.totalorder %s34, %s35
    %p46 = scmp.eq.s32.totalorder %s14, 0
    %p47 = por %p45, %p46
    %p48 = scmp.ne.s32.totalorder %s34, %s35
    %p49 = scmp.eq.s32.totalorder %s15, 78
    %p50 = por %p48, %p49
    %p52 = scmp.ne.s32.totalorder %s35, %s51
    %p53 = scmp.eq.s32.totalorder %s15, 0
    %p54 = por %p52, %p53
    %s55 = ssub.s32 %s17, %s24
    %p56 = scmp.eq.s32.totalorder %s55, 0
    %s58 = sadd.s32 %s57, 1
    %s59 = scalar_select %p56, %s57, %s58
    %p62 = pneg %p56
    %p63 = scmp.eq.s32.totalorder %s9, 78
    %p64 = por %p62, %p63
    %p65 = scmp.ne.s32.totalorder %s57, %s60
    %p66 = scmp.eq.s32.totalorder %s9, 0
    %p67 = por %p65, %p66
    %p68 = scmp.ne.s32.totalorder %s57, %s60
    %p69 = scmp.eq.s32.totalorder %s14, 78
    %p70 = por %p68, %p69
    %p71 = scmp.ne.s32.totalorder %s60, %s61
    %p72 = scmp.eq.s32.totalorder %s14, 0
    %p73 = por %p71, %p72
    %p74 = scmp.ne.s32.totalorder %s60, %s61
    %p75 = scmp.eq.s32.totalorder %s15, 78
    %p76 = por %p74, %p75
    %p78 = scmp.ne.s32.totalorder %s61, %s77
    %p79 = scmp.eq.s32.totalorder %s15, 0
    %p80 = por %p78, %p79
    %s81 = ssub.s32 %s17, %s24
    %p82 = scmp.eq.s32.totalorder %s81, 0
    %s84 = sadd.s32 %s83, 1
    %s85 = scalar_select %p82, %s83, %s84
    %p88 = pneg %p82
    %p89 = scmp.eq.s32.totalorder %s9, 78
    %p90 = por %p88, %p89
    %p91 = scmp.ne.s32.totalorder %s83, %s86
    %p92 = scmp.eq.s32.totalorder %s9, 0
    %p93 = por %p91, %p92
    %p94 = scmp.ne.s32.totalorder %s83, %s86
    %p95 = scmp.eq.s32.totalorder %s14, 78
    %p96 = por %p94, %p95
    %p97 = scmp.ne.s32.totalorder %s86, %s87
    %p98 = scmp.eq.s32.totalorder %s14, 0
    %p99 = por %p97, %p98
    %p100 = scmp.ne.s32.totalorder %s86, %s87
    %p101 = scmp.eq.s32.totalorder %s15, 78
    %p102 = por %p100, %p101
    %p104 = scmp.ne.s32.totalorder %s87, %s103
    %p105 = scmp.eq.s32.totalorder %s15, 0
    %p106 = por %p104, %p105
    %s107 = ssub.s32 %s16, %s28
    %s108 = ssub.s32 %s17, %s24
    %s109 = sor.u32 %s107, %s108
    %p110 = scmp.eq.s32.totalorder %s109, 0
    %s112 = sadd.s32 %s111, 1
    %s113 = scalar_select %p110, %s111, %s112
    %p116 = pneg %p110
    %p117 = scmp.eq.s32.totalorder %s9, 78
    %p118 = por %p116, %p117
    %p119 = scmp.ne.s32.totalorder %s111, %s114
    %p120 = scmp.eq.s32.totalorder %s9, 0
    %p121 = por %p119, %p120
    %p122 = scmp.ne.s32.totalorder %s111, %s114
    %p123 = scmp.eq.s32.totalorder %s14, 78
    %p124 = por %p122, %p123
    %p125 = scmp.ne.s32.totalorder %s114, %s115
    %p126 = scmp.eq.s32.totalorder %s14, 0
    %p127 = por %p125, %p126
    %p128 = scmp.ne.s32.totalorder %s114, %s115
    %p129 = scmp.eq.s32.totalorder %s15, 78
    %p130 = por %p128, %p129
    %p132 = scmp.ne.s32.totalorder %s115, %s131
    %p133 = scmp.eq.s32.totalorder %s15, 0
    %p134 = por %p132, %p133
    %p135 = scmp.le.s32.totalorder 1, %s9
    %p136 = scmp.lt.s32.totalorder %s9, 80
    %p137 = pnand %p135, %p136
    %p138 = pneg %p137
    // Predicated region
    $region9: #{tpu_custom_call.1} parent=5 // pred_check
      _
    $region10: #{tpu_custom_call.1} parent=5 // pred_check_branch
      %140 = sbr.rel (%p137) target = $region12
    $region11: #{tpu_custom_call.1} parent=5 // pred_region
      %s141 = ssub.s32 %s9, 1
      // Predicated region
      $region13: #{tpu_custom_call.1} parent=11 // pred_check
        %p142 = pneg %p73
      $region14: #{tpu_custom_call.1} parent=11 // pred_check_branch
        %144 = sbr.rel (%p142) target = $region16
      $region15: #{tpu_custom_call.1} parent=11 // pred_region
        %p145 = scmp.lt.s32.totalorder %s19, 0
        %s146 = scalar_select %p145, %s19, 0
        %s147 = smul.addr %s146, 4
        %s148 = scalar_lea.vmem %s1, %s147
      $region16: #{tpu_custom_call.1} parent=11 // pred_fallthru
        _
      // Predicated region
      $region17: #{tpu_custom_call.1} parent=11 // pred_check
        %p149 = pneg %p99
      $region18: #{tpu_custom_call.1} parent=11 // pred_check_branch
        %151 = sbr.rel (%p149) target = $region20
      $region19: #{tpu_custom_call.1} parent=11 // pred_region
        %p152 = scmp.lt.s32.totalorder %s19, 0
        %s153 = scalar_select %p152, %s19, 0
        %s154 = scalar_lea.vmem %s2, %s153
      $region20: #{tpu_custom_call.1} parent=11 // pred_fallthru
        _
    $region12: #{tpu_custom_call.1} parent=5 // pred_fallthru
      _
    %p155 = scmp.lt.s32.totalorder %s9, 79
    // Predicated region
    $region21: #{tpu_custom_call.1} parent=5 // pred_check
      %p156 = pneg %p155
    $region22: #{tpu_custom_call.1} parent=5 // pred_check_branch
      %158 = sbr.rel (%p156) target = $region24
    $region23: #{tpu_custom_call.1} parent=5 // pred_region
      // Predicated region
      $region25: #{tpu_custom_call.1} parent=23 // pred_check
        %p159 = pneg %p41
      $region26: #{tpu_custom_call.1} parent=23 // pred_check_branch
        %161 = sbr.rel (%p159) target = $region28
      $region27: #{tpu_custom_call.1} parent=23 // pred_region
        %s162 = smul.u32 32, %s16
        %p163 = scmp.lt.s32.totalorder %s162, 2527
        %s164 = scalar_select %p163, %s162, 2527
        %s165 = smul.addr %s164, 4
        %s166 = scalar_lea.vmem %s0, %s165
        %s167 = smul.u32 32, %s16
      $region28: #{tpu_custom_call.1} parent=23 // pred_fallthru
        _
    $region24: #{tpu_custom_call.1} parent=5 // pred_fallthru
      _
    %p168 = scmp.le.s32.totalorder 1, %s9
    %p169 = scmp.lt.s32.totalorder %s9, 80
    %p170 = pnand %p168, %p169
    %p171 = pneg %p170
    // Predicated region
    $region29: #{tpu_custom_call.1} parent=5 // pred_check
      _
    $region30: #{tpu_custom_call.1} parent=5 // pred_check_branch
      %173 = sbr.rel (%p170) target = $region32
    $region31: #{tpu_custom_call.1} parent=5 // pred_region
      %s174 = ssub.s32 %s9, 1
      %s175 = smul.u32 32, %s18
      %p176 = scmp.lt.s32.totalorder %s175, 2527
      %s177 = scalar_select %p176, %s175, 2527
      %s178 = smul.addr %s177, 4
      %s179 = scalar_lea.vmem %s0, %s178
      %p180 = pneg %p47
      %p181 = pneg %p44
      %p182 = scmp.lt.s32.totalorder %s19, 0
      %s183 = scalar_select %p182, %s19, 0
      %s184 = smul.addr %s183, 4
      %s185 = scalar_lea.vmem %s1, %s184
      %p186 = pneg %p73
      %p187 = pneg %p70
      %p188 = scmp.lt.s32.totalorder %s19, 0
      %s189 = scalar_select %p188, %s19, 0
      %s190 = scalar_lea.vmem %s2, %s189
      %p191 = pneg %p99
      %p192 = pneg %p96
      %p193 = pneg %p127
      %p194 = pneg %p124
      %s195 = smul.u32 32, %s18
      %p196 = scmp.lt.s32.totalorder %s195, 2527
      %s197 = scalar_select %p196, %s195, 2527
      %p198 = scmp.lt.s32.totalorder %s19, 0
      %s199 = scalar_select %p198, %s19, 0
      %s200 = sadd.s32 %s199, %s197
      %s201 = smul.addr %s200, 8
      %s202 = scalar_lea.vmem %s3, %s201
      %s203 = smul.u32 32, %s18
      %p204 = scmp.lt.s32.totalorder %s203, 2527
      %s205 = scalar_select %p204, %s203, 2527
      %s206 = smul.addr %s205, 4
      %s207 = scalar_lea.vmem %s0, %s206
      %s208 = smul.u32 32, %s18
      %p209 = scmp.lt.s32.totalorder %s19, 0
      %s210 = scalar_select %p209, %s19, 0
      %s211 = smul.addr %s210, 4
      %s212 = scalar_lea.vmem %s1, %s211
      %p213 = scmp.lt.s32.totalorder %s19, 0
      %s214 = scalar_select %p213, %s19, 0
      %s215 = scalar_lea.vmem %s2, %s214
      %s216 = smul.u32 32, %s18
      %p217 = scmp.lt.s32.totalorder %s216, 2527
      %s218 = scalar_select %p217, %s216, 2527
      %p219 = scmp.lt.s32.totalorder %s19, 0
      %s220 = scalar_select %p219, %s19, 0
      %s221 = sadd.s32 %s220, %s218
      %s222 = smul.addr %s221, 8
      %s223 = scalar_lea.vmem %s3, %s222
      %s224 = smul.u32 32, %s18
      %v226 = vld [vmem:[%s207] sm:$0xf]
      %v227 = vld [vmem:[%s207 + $0x4] sm:$0xf]
      %v228 = vld [vmem:[%s207 + $0x8] sm:$0xf]
      %v229 = vld [vmem:[%s207 + $0xc] sm:$0xf]
      %v230 = vld [vmem:[%s207 + $0x10] sm:$0xf]
      %v231 = vld [vmem:[%s207 + $0x14] sm:$0xf]
      %v232 = vld [vmem:[%s207 + $0x18] sm:$0xf]
      %v233 = vld [vmem:[%s207 + $0x1c] sm:$0xf]
      %v234 = vld [vmem:[%s207 + $0x20] sm:$0xf]
      %v235 = vld [vmem:[%s207 + $0x24] sm:$0xf]
      %v236 = vld [vmem:[%s207 + $0x28] sm:$0xf]
      %v237 = vld [vmem:[%s207 + $0x2c] sm:$0xf]
      %v238 = vld [vmem:[%s207 + $0x30] sm:$0xf]
      %v239 = vld [vmem:[%s207 + $0x34] sm:$0xf]
      %v240 = vld [vmem:[%s207 + $0x38] sm:$0xf]
      %v241 = vld [vmem:[%s207 + $0x3c] sm:$0xf]
      %v242 = vld [vmem:[%s207 + $0x40] sm:$0xf]
      %v243 = vld [vmem:[%s207 + $0x44] sm:$0xf]
      %v244 = vld [vmem:[%s207 + $0x48] sm:$0xf]
      %v245 = vld [vmem:[%s207 + $0x4c] sm:$0xf]
      %v246 = vld [vmem:[%s207 + $0x50] sm:$0xf]
      %v247 = vld [vmem:[%s207 + $0x54] sm:$0xf]
      %v248 = vld [vmem:[%s207 + $0x58] sm:$0xf]
      %v249 = vld [vmem:[%s207 + $0x5c] sm:$0xf]
      %v250 = vld [vmem:[%s207 + $0x60] sm:$0xf]
      %v251 = vld [vmem:[%s207 + $0x64] sm:$0xf]
      %v252 = vld [vmem:[%s207 + $0x68] sm:$0xf]
      %v253 = vld [vmem:[%s207 + $0x6c] sm:$0xf]
      %v254 = vld [vmem:[%s207 + $0x70] sm:$0xf]
      %v255 = vld [vmem:[%s207 + $0x74] sm:$0xf]
      %v256 = vld [vmem:[%s207 + $0x78] sm:$0xf]
      %v257 = vld [vmem:[%s207 + $0x7c] sm:$0xf]
      %v258 = vld [vmem:[%s212] sm:$0xf]
      %v259 = vld [vmem:[%s212 + $0x4] sm:$0x1]
      %v260 = vld [vmem:[%s215] sm:$0x1]
      %v262 = vlaneseq
      %v263 = vshrl.u32 %v262, 7
      %v264 = vsub.s32 0, %v263
      %v265 = vrot.slane %v260, %v264
      %v299 = vunpack.c.l.b16 %v226
      %v300 = vunpack.c.l.b16 %v227
      %v301 = vunpack.c.l.b16 %v228
      %v302 = vunpack.c.l.b16 %v229
      %v303 = vunpack.c.l.b16 %v230
      %v304 = vunpack.c.l.b16 %v231
      %v305 = vunpack.c.l.b16 %v232
      %v306 = vunpack.c.l.b16 %v233
      %v307 = vunpack.c.l.b16 %v234
      %v308 = vunpack.c.l.b16 %v235
      %v309 = vunpack.c.l.b16 %v236
      %v310 = vunpack.c.l.b16 %v237
      %v311 = vunpack.c.l.b16 %v238
      %v312 = vunpack.c.l.b16 %v239
      %v313 = vunpack.c.l.b16 %v240
      %v314 = vunpack.c.l.b16 %v241
      %v315 = vunpack.c.l.b16 %v242
      %v316 = vunpack.c.l.b16 %v243
      %v317 = vunpack.c.l.b16 %v244
      %v318 = vunpack.c.l.b16 %v245
      %v319 = vunpack.c.l.b16 %v246
      %v320 = vunpack.c.l.b16 %v247
      %v321 = vunpack.c.l.b16 %v248
      %v322 = vunpack.c.l.b16 %v249
      %v323 = vunpack.c.l.b16 %v250
      %v324 = vunpack.c.l.b16 %v251
      %v325 = vunpack.c.l.b16 %v252
      %v326 = vunpack.c.l.b16 %v253
      %v327 = vunpack.c.l.b16 %v254
      %v328 = vunpack.c.l.b16 %v255
      %v329 = vunpack.c.l.b16 %v256
      %v330 = vunpack.c.l.b16 %v257
      %v331 = vpack.c.b16 %v300, %v299
      %v332 = vpack.c.b16 %v302, %v301
      %v333 = vpack.c.b16 %v304, %v303
      %v334 = vpack.c.b16 %v306, %v305
      %v335 = vpack.c.b16 %v308, %v307
      %v336 = vpack.c.b16 %v310, %v309
      %v337 = vpack.c.b16 %v312, %v311
      %v338 = vpack.c.b16 %v314, %v313
      %v339 = vpack.c.b16 %v316, %v315
      %v340 = vpack.c.b16 %v318, %v317
      %v341 = vpack.c.b16 %v320, %v319
      %v342 = vpack.c.b16 %v322, %v321
      %v343 = vpack.c.b16 %v324, %v323
      %v344 = vpack.c.b16 %v326, %v325
      %v345 = vpack.c.b16 %v328, %v327
      %v346 = vpack.c.b16 %v330, %v329
      %v349 = vunpack.c.l.b16 %v258
      %v350 = vunpack.c.l.b16 %v259
      %v351 = vpack.c.b16 %v350, %v349
      %vm352 = vcmask 72704
      %v354 = vsel %vm352, %v331, 0
      %v357 = vsel %vm352, %v332, 0
      %v360 = vsel %vm352, %v333, 0
      %v363 = vsel %vm352, %v334, 0
      %v366 = vsel %vm352, %v335, 0
      %v369 = vsel %vm352, %v336, 0
      %v372 = vsel %vm352, %v337, 0
      %v375 = vsel %vm352, %v338, 0
      %v378 = vsel %vm352, %v339, 0
      %v381 = vsel %vm352, %v340, 0
      %v384 = vsel %vm352, %v341, 0
      %v387 = vsel %vm352, %v342, 0
      %v390 = vsel %vm352, %v343, 0
      %v393 = vsel %vm352, %v344, 0
      %v396 = vsel %vm352, %v345, 0
      %v399 = vsel %vm352, %v346, 0
      %vm401 = vcmask 1043456
      %vm402 = vcmask 1044480
      %v403 = vsel %vm401, 4294967295, 65535
      %v404 = vsel %vm402, %v403, 0
      %v406 = vand.u32 %v351, %v404
      %408 = vmatprep.subr.bf16.mxu0 0
      %409 = vmatpush1.bf16.msra.mxu0 %v406
      %410 = vmatprep.subr.bf16.mxu0 0
      %411 = vmatpush1.bf16.msra.mxu0 0
      %412 = vmatprep.subr.bf16.mxu0 0
      %413 = vmatpush1.bf16.msra.mxu0 0
      %414 = vmatprep.subr.bf16.mxu0 0
      %415 = vmatpush1.bf16.msra.mxu0 0
      %416 = vmatprep.subr.bf16.mxu0 0
      %417 = vmatpush1.bf16.msra.mxu0 0
      %418 = vmatprep.subr.bf16.mxu0 0
      %419 = vmatpush1.bf16.msra.mxu0 0
      %420 = vmatprep.subr.bf16.mxu0 0
      %421 = vmatpush1.bf16.msra.mxu0 0
      %422 = vmatprep.subr.bf16.mxu0 0
      %423 = vmatpush1.bf16.msra.mxu0 0
      %424 = vmatprep.subr.bf16.mxu0 0
      %425 = vmatpush1.bf16.msra.mxu0 0
      %426 = vmatprep.subr.bf16.mxu0 0
      %427 = vmatpush1.bf16.msra.mxu0 0
      %428 = vmatprep.subr.bf16.mxu0 0
      %429 = vmatpush1.bf16.msra.mxu0 0
      %430 = vmatprep.subr.bf16.mxu0 0
      %431 = vmatpush1.bf16.msra.mxu0 0
      %432 = vmatprep.subr.bf16.mxu0 0
      %433 = vmatpush1.bf16.msra.mxu0 0
      %434 = vmatprep.subr.bf16.mxu0 0
      %435 = vmatpush1.bf16.msra.mxu0 0
      %436 = vmatprep.subr.bf16.mxu0 0
      %437 = vmatpush1.bf16.msra.mxu0 0
      %438 = vmatprep.subr.bf16.mxu0 0
      %439 = vmatpush1.bf16.msra.mxu0 0
      %440 = vmatprep.mubr.bf16.mxu0 0
      %441 = vmatmul.mubr.bf16.gmra.mrb[0].mxu0 %v354
      %v442 = vpop.f32.mrb[0].mxu0
      %v443 = vadd.f32 %v265, %v442
      %v444 = vpop.f32.mrb[0].mxu0
      %v445 = vpop.f32.mrb[0].mxu0
      %v446 = vadd.f32 %v265, %v445
      %v447 = vpop.f32.mrb[0].mxu0
      %448 = vmatprep.mubr.bf16.mxu0 0
      %449 = vmatmul.mubr.bf16.gmra.mrb[0].mxu0 %v357
      %v450 = vpop.f32.mrb[0].mxu0
      %v451 = vadd.f32 %v265, %v450
      %v452 = vpop.f32.mrb[0].mxu0
      %v453 = vpop.f32.mrb[0].mxu0
      %v454 = vadd.f32 %v265, %v453
      %v455 = vpop.f32.mrb[0].mxu0
      %456 = vmatprep.mubr.bf16.mxu0 0
      %457 = vmatmul.mubr.bf16.gmra.mrb[0].mxu0 %v360
      %v458 = vpop.f32.mrb[0].mxu0
      %v459 = vadd.f32 %v265, %v458
      %v460 = vpop.f32.mrb[0].mxu0
      %v461 = vpop.f32.mrb[0].mxu0
      %v462 = vadd.f32 %v265, %v461
      %v463 = vpop.f32.mrb[0].mxu0
      %464 = vmatprep.mubr.bf16.mxu0 0
      %465 = vmatmul.mubr.bf16.gmra.mrb[0].mxu0 %v363
      %v466 = vpop.f32.mrb[0].mxu0
      %v467 = vadd.f32 %v265, %v466
      %v468 = vpop.f32.mrb[0].mxu0
      %v469 = vpop.f32.mrb[0].mxu0
      %v470 = vadd.f32 %v265, %v469
      %v471 = vpop.f32.mrb[0].mxu0
      %472 = vmatprep.mubr.bf16.mxu0 0
      %473 = vmatmul.mubr.bf16.gmra.mrb[0].mxu0 %v366
      %v474 = vpop.f32.mrb[0].mxu0
      %v475 = vadd.f32 %v265, %v474
      %v476 = vpop.f32.mrb[0].mxu0
      %v477 = vpop.f32.mrb[0].mxu0
      %v478 = vadd.f32 %v265, %v477
      %v479 = vpop.f32.mrb[0].mxu0
      %480 = vmatprep.mubr.bf16.mxu0 0
      %481 = vmatmul.mubr.bf16.gmra.mrb[0].mxu0 %v369
      %v482 = vpop.f32.mrb[0].mxu0
      %v483 = vadd.f32 %v265, %v482
      %v484 = vpop.f32.mrb[0].mxu0
      %v485 = vpop.f32.mrb[0].mxu0
      %v486 = vadd.f32 %v265, %v485
      %v487 = vpop.f32.mrb[0].mxu0
      %488 = vmatprep.mubr.bf16.mxu0 0
      %489 = vmatmul.mubr.bf16.gmra.mrb[0].mxu0 %v372
      %v490 = vpop.f32.mrb[0].mxu0
      %v491 = vadd.f32 %v265, %v490
      %v492 = vpop.f32.mrb[0].mxu0
      %v493 = vpop.f32.mrb[0].mxu0
      %v494 = vadd.f32 %v265, %v493
      %v495 = vpop.f32.mrb[0].mxu0
      %496 = vmatprep.mubr.bf16.mxu0 0
      %497 = vmatmul.mubr.bf16.gmra.mrb[0].mxu0 %v375
      %v498 = vpop.f32.mrb[0].mxu0
      %v499 = vadd.f32 %v265, %v498
      %v500 = vpop.f32.mrb[0].mxu0
      %v501 = vpop.f32.mrb[0].mxu0
      %v502 = vadd.f32 %v265, %v501
      %v503 = vpop.f32.mrb[0].mxu0
      %504 = vmatprep.mubr.bf16.mxu0 0
      %505 = vmatmul.mubr.bf16.gmra.mrb[0].mxu0 %v378
      %v506 = vpop.f32.mrb[0].mxu0
      %v507 = vadd.f32 %v265, %v506
      %v508 = vpop.f32.mrb[0].mxu0
      %v509 = vpop.f32.mrb[0].mxu0
      %v510 = vadd.f32 %v265, %v509
      %v511 = vpop.f32.mrb[0].mxu0
      %512 = vmatprep.mubr.bf16.mxu0 0
      %513 = vmatmul.mubr.bf16.gmra.mrb[0].mxu0 %v381
      %v514 = vpop.f32.mrb[0].mxu0
      %v515 = vadd.f32 %v265, %v514
      %v516 = vpop.f32.mrb[0].mxu0
      %v517 = vpop.f32.mrb[0].mxu0
      %v518 = vadd.f32 %v265, %v517
      %v519 = vpop.f32.mrb[0].mxu0
      %520 = vmatprep.mubr.bf16.mxu0 0
      %521 = vmatmul.mubr.bf16.gmra.mrb[0].mxu0 %v384
      %v522 = vpop.f32.mrb[0].mxu0
      %v523 = vadd.f32 %v265, %v522
      %v524 = vpop.f32.mrb[0].mxu0
      %v525 = vpop.f32.mrb[0].mxu0
      %v526 = vadd.f32 %v265, %v525
      %v527 = vpop.f32.mrb[0].mxu0
      %528 = vmatprep.mubr.bf16.mxu0 0
      %529 = vmatmul.mubr.bf16.gmra.mrb[0].mxu0 %v387
      %v530 = vpop.f32.mrb[0].mxu0
      %v531 = vadd.f32 %v265, %v530
      %v532 = vpop.f32.mrb[0].mxu0
      %v533 = vpop.f32.mrb[0].mxu0
      %v534 = vadd.f32 %v265, %v533
      %v535 = vpop.f32.mrb[0].mxu0
      %536 = vmatprep.mubr.bf16.mxu0 0
      %537 = vmatmul.mubr.bf16.gmra.mrb[0].mxu0 %v390
      %v538 = vpop.f32.mrb[0].mxu0
      %v539 = vadd.f32 %v265, %v538
      %v540 = vpop.f32.mrb[0].mxu0
      %v541 = vpop.f32.mrb[0].mxu0
      %v542 = vadd.f32 %v265, %v541
      %v543 = vpop.f32.mrb[0].mxu0
      %544 = vmatprep.mubr.bf16.mxu0 0
      %545 = vmatmul.mubr.bf16.gmra.mrb[0].mxu0 %v393
      %v546 = vpop.f32.mrb[0].mxu0
      %v547 = vadd.f32 %v265, %v546
      %v548 = vpop.f32.mrb[0].mxu0
      %v549 = vpop.f32.mrb[0].mxu0
      %v550 = vadd.f32 %v265, %v549
      %v551 = vpop.f32.mrb[0].mxu0
      %552 = vmatprep.mubr.bf16.mxu0 0
      %553 = vmatmul.mubr.bf16.gmra.mrb[0].mxu0 %v396
      %v554 = vpop.f32.mrb[0].mxu0
      %v555 = vadd.f32 %v265, %v554
      %v556 = vpop.f32.mrb[0].mxu0
      %v557 = vpop.f32.mrb[0].mxu0
      %v558 = vadd.f32 %v265, %v557
      %v559 = vpop.f32.mrb[0].mxu0
      %560 = vmatprep.mubr.bf16.mxu0 0
      %561 = vmatmul.mubr.bf16.gmra.mrb[0].mxu0 %v399
      %v562 = vpop.f32.mrb[0].mxu0
      %v563 = vadd.f32 %v265, %v562
      %v564 = vpop.f32.mrb[0].mxu0
      %v565 = vpop.f32.mrb[0].mxu0
      %v566 = vadd.f32 %v265, %v565
      %v567 = vpop.f32.mrb[0].mxu0
      %568 = vdwg.mxu0
      %vm569 = vcmask 523264
      %570 = vst.msk [vmem:[%s223] sm:$0xff] %vm569, %v443
      %571 = vst.msk [vmem:[%s223 + $0x8] sm:$0xff] %vm569, %v446
      %572 = vst.msk [vmem:[%s223 + $0x10] sm:$0xff] %vm569, %v451
      %573 = vst.msk [vmem:[%s223 + $0x18] sm:$0xff] %vm569, %v454
      %574 = vst.msk [vmem:[%s223 + $0x20] sm:$0xff] %vm569, %v459
      %575 = vst.msk [vmem:[%s223 + $0x28] sm:$0xff] %vm569, %v462
      %576 = vst.msk [vmem:[%s223 + $0x30] sm:$0xff] %vm569, %v467
      %577 = vst.msk [vmem:[%s223 + $0x38] sm:$0xff] %vm569, %v470
      %578 = vst.msk [vmem:[%s223 + $0x40] sm:$0xff] %vm569, %v475
      %579 = vst.msk [vmem:[%s223 + $0x48] sm:$0xff] %vm569, %v478
      %580 = vst.msk [vmem:[%s223 + $0x50] sm:$0xff] %vm569, %v483
      %581 = vst.msk [vmem:[%s223 + $0x58] sm:$0xff] %vm569, %v486
      %582 = vst.msk [vmem:[%s223 + $0x60] sm:$0xff] %vm569, %v491
      %583 = vst.msk [vmem:[%s223 + $0x68] sm:$0xff] %vm569, %v494
      %584 = vst.msk [vmem:[%s223 + $0x70] sm:$0xff] %vm569, %v499
      %585 = vst.msk [vmem:[%s223 + $0x78] sm:$0xff] %vm569, %v502
      %586 = vst.msk [vmem:[%s223 + $0x80] sm:$0xff] %vm569, %v507
      %587 = vst.msk [vmem:[%s223 + $0x88] sm:$0xff] %vm569, %v510
      %588 = vst.msk [vmem:[%s223 + $0x90] sm:$0xff] %vm569, %v515
      %589 = vst.msk [vmem:[%s223 + $0x98] sm:$0xff] %vm569, %v518
      %590 = vst.msk [vmem:[%s223 + $0xa0] sm:$0xff] %vm569, %v523
      %591 = vst.msk [vmem:[%s223 + $0xa8] sm:$0xff] %vm569, %v526
      %592 = vst.msk [vmem:[%s223 + $0xb0] sm:$0xff] %vm569, %v531
      %593 = vst.msk [vmem:[%s223 + $0xb8] sm:$0xff] %vm569, %v534
      %594 = vst.msk [vmem:[%s223 + $0xc0] sm:$0xff] %vm569, %v539
      %595 = vst.msk [vmem:[%s223 + $0xc8] sm:$0xff] %vm569, %v542
      %596 = vst.msk [vmem:[%s223 + $0xd0] sm:$0xff] %vm569, %v547
      %597 = vst.msk [vmem:[%s223 + $0xd8] sm:$0xff] %vm569, %v550
      %598 = vst.msk [vmem:[%s223 + $0xe0] sm:$0xff] %vm569, %v555
      %599 = vst.msk [vmem:[%s223 + $0xe8] sm:$0xff] %vm569, %v558
      %600 = vst.msk [vmem:[%s223 + $0xf0] sm:$0xff] %vm569, %v563
      %601 = vst.msk [vmem:[%s223 + $0xf8] sm:$0xff] %vm569, %v566
      %s602 = smul.u32 32, %s18
      %p603 = scmp.lt.s32.totalorder %s602, 2527
      %s604 = scalar_select %p603, %s602, 2527
      %p605 = scmp.lt.s32.totalorder %s19, 0
      %s606 = scalar_select %p605, %s19, 0
      %s607 = sadd.s32 %s606, %s604
      %s608 = smul.addr %s607, 8
      %s609 = scalar_lea.vmem %s3, %s608
      // Predicated region
      $region33: #{tpu_custom_call.1} parent=31 // pred_check
        %p610 = pneg %p124
      $region34: #{tpu_custom_call.1} parent=31 // pred_check_branch
        %612 = sbr.rel (%p610) target = $region36
      $region35: #{tpu_custom_call.1} parent=31 // pred_region
        %s613 = smul.u32 32, %s18
      $region36: #{tpu_custom_call.1} parent=31 // pred_fallthru
        _
    $region32: #{tpu_custom_call.1} parent=5 // pred_fallthru
      _
    %p614 = scmp.le.s32.totalorder 2, %s9
    // Predicated region
    $region37: #{tpu_custom_call.1} parent=5 // pred_check
      %p615 = pneg %p614
    $region38: #{tpu_custom_call.1} parent=5 // pred_check_branch
      %617 = sbr.rel (%p615) target = $region40
    $region39: #{tpu_custom_call.1} parent=5 // pred_region
      %s618 = ssub.s32 %s9, 2
      // Predicated region
      $region41: #{tpu_custom_call.1} parent=39 // pred_check
        %p619 = pneg %p130
      $region42: #{tpu_custom_call.1} parent=39 // pred_check_branch
        %621 = sbr.rel (%p619) target = $region44
      $region43: #{tpu_custom_call.1} parent=39 // pred_region
        %s622 = smul.u32 32, %s20
        %p623 = scmp.lt.s32.totalorder %s622, 2527
        %s624 = scalar_select %p623, %s622, 2527
        %p625 = scmp.lt.s32.totalorder %s21, 0
        %s626 = scalar_select %p625, %s21, 0
        %s627 = sadd.s32 %s626, %s624
        %s628 = smul.addr %s627, 8
        %s629 = scalar_lea.vmem %s3, %s628
      $region44: #{tpu_custom_call.1} parent=39 // pred_fallthru
        _
    $region40: #{tpu_custom_call.1} parent=5 // pred_fallthru
      _
  $region6: #{tpu_custom_call.1} parent=0 // loop_footer
    %s13 = sadd.s32 1, %s9
  $region7: #{tpu_custom_call.1} parent=0 // loop_footer_branch
    %8 = sbr.rel target = $region3
  $region8: #{tpu_custom_call.1} parent=0 // loop_exit
    _

</llo_original>
